<compile_context>
chip_gen: v6e
topology: v6e:2x2x1
jax: 0.10.0
libtpu: 0.0.40
codegen_flags: <defaults>
</compile_context>

<pallas_src>
import functools

import jax
import jax.numpy as jnp
from jax import lax
from jax.experimental import pallas as pl
from jax.experimental.pallas import tpu as pltpu


def _round_up(a: int, b: int) -> int:
    return (a + b - 1) // b * b


# ---------------------------------------------------------------------------
# Kernels
# ---------------------------------------------------------------------------

def _linear_kernel_multi_k(x_ref, w_ref, b_ref, o_ref, acc_ref, *, precision):
    """K-tiled variant: f32 accumulator resident in VMEM across the K grid axis."""
    k = pl.program_id(2)

    # Bias folded into the accumulator init: saves a (tm, tn) f32 add pass and
    # an extra accumulator read in the epilogue.
    @pl.when(k == 0)
    def _():
        acc_ref[...] = jnp.broadcast_to(b_ref[...], acc_ref.shape)

    # Fused input cast (hides under the MXU).  W stays in its natural
    # nn.Linear (N, K) layout; the trans_b-style contraction feeds the MXU
    # directly (no per-tile XLU transpose of the weight).
    x_tile = x_ref[...].astype(w_ref.dtype)
    acc_ref[...] += lax.dot_general(
        x_tile, w_ref[...],
        dimension_numbers=(((1,), (1,)), ((), ())),   # x[M,K] @ W[N,K]^T
        preferred_element_type=jnp.float32,
        precision=precision)

    @pl.when(k == pl.num_programs(2) - 1)
    def _():
        # F.linear's output is weight dtype, then TestLinear casts back to the
        # input dtype -> round-trip through both (no-ops when they match).
        o_ref[...] = acc_ref[...].astype(w_ref.dtype).astype(o_ref.dtype)


def _linear_kernel_full_k(x_ref, w_ref, b_ref, o_ref, *, precision):
    """Full-K variant: no VMEM accumulator RMW; epilogue fused onto MXU result."""
    x_tile = x_ref[...].astype(w_ref.dtype)
    acc = lax.dot_general(
        x_tile, w_ref[...],
        dimension_numbers=(((1,), (1,)), ((), ())),
        preferred_element_type=jnp.float32,
        precision=precision)
    y = acc + b_ref[...]
    o_ref[...] = y.astype(w_ref.dtype).astype(o_ref.dtype)


# ---------------------------------------------------------------------------
# Tile selection
# ---------------------------------------------------------------------------

def _vmem_params() -> tuple[int, int]:
    """(tile_budget_bytes, vmem_limit_bytes) per TPU generation.

    v7x has 64 MiB VMEM per TensorCore; v5e/v6e have 128 MiB.  The scoped
    default limit (16/32 MiB) is far below either, so raise it explicitly and
    size tiles against a generation-specific budget with headroom for
    compiler-internal scratch.
    """
    try:
        kind = jax.devices()[0].device_kind.lower()
    except Exception:  # pragma: no cover - e.g. interpret mode off-TPU
        kind = ""
    if "v7" in kind:
        return 40 << 20, 56 << 20
    if "v5" in kind or "v6" in kind:
        return 80 << 20, 100 << 20
    return 40 << 20, 56 << 20            # unknown generation: stay conservative


def _choose_tiles(M, N, K, x_sz, w_sz, o_sz, needs_cast, budget):
    """Largest (tm, tn, tk) whose pipelined VMEM footprint fits the budget."""

    def footprint(tm, tn, tk):
        return (2 * tm * tk * x_sz                      # x tiles (double-buffered)
                + 2 * tn * tk * w_sz                    # W tiles (double-buffered)
                + 2 * tm * tn * o_sz                    # out tiles (double-buffered)
                + tm * tn * 4                           # f32 accumulator / MXU result
                + 2 * tn * 4                            # bias
                + (tm * tk * w_sz if needs_cast else 0))  # in-kernel cast temp

    # Full-dim blocks for small/medium dims (no wrapper-side padding copies),
    # aligned 1024/512/256/128 tiles otherwise.
    tm_opts = [M] if M <= 1024 else [1024, 512, 256, 128]
    tn_opts = [N] if N <= 1024 else [1024, 512, 256, 128]
    tk_opts = ([K] if K <= 8192 else []) + \
              [c for c in (4096, 2048, 1024, 512, 256, 128) if c < K]

    for tm in tm_opts:
        for tn in tn_opts:
            for tk in tk_opts:
                if footprint(tm, tn, tk) <= budget:
                    return tm, tn, tk
    return tm_opts[-1], tn_opts[-1], tk_opts[-1]


# ---------------------------------------------------------------------------
# Wrapper
# ---------------------------------------------------------------------------

def _pallas_linear_2d(x2, weight, bias, out_dtype):
    """x2: (M, K) in its original dtype; weight: (N, K); bias: (N,) -> (M, N)."""
    M, K = x2.shape
    N = weight.shape[0]

    needs_cast = x2.dtype != weight.dtype
    budget, vmem_limit = _vmem_params()
    tm, tn, tk = _choose_tiles(
        M, N, K,
        x2.dtype.itemsize, weight.dtype.itemsize, jnp.dtype(out_dtype).itemsize,
        needs_cast, budget)

    # v7x has two TensorCores: when the whole problem fits one (M, N) block,
    # keep >= 2 blocks on the N "parallel" axis so megacore sharding has
    # something to split (a (1, 1, K) grid idles one core).
    if M <= tm and N <= tn and N % 256 == 0:
        tn = N // 2

    m_pad = _round_up(M, tm)
    n_pad = _round_up(N, tn)
    k_pad = _round_up(K, tk)

    # Only pad when a dim is ragged w.r.t. its tile; full-dim blocks on small
    # dims avoid the extra wrapper-side HBM pass entirely.
    if (m_pad, k_pad) != (M, K):
        x2 = jnp.pad(x2, ((0, m_pad - M), (0, k_pad - K)))
    if (n_pad, k_pad) != (N, K):
        weight = jnp.pad(weight, ((0, n_pad - N), (0, k_pad - K)))
    b = bias.astype(jnp.float32).reshape(1, N)
    if n_pad != N:
        b = jnp.pad(b, ((0, 0), (0, n_pad - N)))

    grid = (m_pad // tm, n_pad // tn, k_pad // tk)
    single_k = grid[2] == 1

    # Match PyTorch's true fp32 matmul on the f32-weight branch; bf16 / other
    # low-precision weights use the default MXU path.
    precision = (lax.Precision.HIGHEST if weight.dtype == jnp.float32
                 else lax.Precision.DEFAULT)

    if single_k:
        kernel = functools.partial(_linear_kernel_full_k, precision=precision)
        scratch = []
    else:
        kernel = functools.partial(_linear_kernel_multi_k, precision=precision)
        scratch = [pltpu.VMEM((tm, tn), jnp.float32)]

    flops = 2 * m_pad * n_pad * k_pad
    bytes_accessed = (
        m_pad * k_pad * x2.dtype.itemsize
        + n_pad * k_pad * weight.dtype.itemsize
        + n_pad * 4
        + m_pad * n_pad * jnp.dtype(out_dtype).itemsize)

    out = pl.pallas_call(
        kernel,
        out_shape=jax.ShapeDtypeStruct((m_pad, n_pad), out_dtype),
        grid_spec=pltpu.PrefetchScalarGridSpec(
            num_scalar_prefetch=0,
            grid=grid,
            in_specs=[
                pl.BlockSpec((tm, tk), lambda i, j, k: (i, k)),   # x tile
                pl.BlockSpec((tn, tk), lambda i, j, k: (j, k)),   # W tile (N, K layout)
                pl.BlockSpec((1, tn), lambda i, j, k: (0, j)),    # bias tile (f32)
            ],
            out_specs=pl.BlockSpec((tm, tn), lambda i, j, k: (i, j)),
            scratch_shapes=scratch,
        ),
        compiler_params=pltpu.CompilerParams(
            # M/N parallel (megacore sharding), K reduction arbitrary.
            dimension_semantics=("parallel", "parallel", "arbitrary"),
            vmem_limit_bytes=vmem_limit,
        ),
        cost_estimate=pl.CostEstimate(
            flops=flops, transcendentals=0, bytes_accessed=bytes_accessed),
    )(x2, weight, b)

    if (m_pad, n_pad) != (M, N):
        out = out[:M, :N]
    return out


@jax.jit
def test_linear_forward(x, weight, bias=None):
    """Reproduces TestLinear.forward (bias stored in float32, weight in its own dtype)."""
    out_features, in_features = weight.shape
    if bias is None:
        bias = jnp.zeros((out_features,), jnp.float32)

    lead = x.shape[:-1]
    x2 = x.reshape(-1, in_features)                      # keep original dtype; cast fused in-kernel
    y2 = _pallas_linear_2d(x2, weight, bias, x.dtype)    # (M, out) already in x.dtype
    return y2.reshape(lead + (out_features,))


if __name__ == "__main__":
    key = jax.random.PRNGKey(0)
    k_x, k_w, k_b = jax.random.split(key, 3)

    in_features = 32
    out_features = 16
    batch, seq = 2, 8

    # Weight stored in bf16, bias in f32, input in f32 -> exercises the
    # dtype-mismatch branch of TestLinear.forward.
    weight = jax.random.normal(k_w, (out_features, in_features), jnp.float32)
    weight = (weight * 0.1).astype(jnp.bfloat16)
    bias = jax.random.normal(k_b, (out_features,), jnp.float32) * 0.1
    x = jax.random.normal(k_x, (batch, seq, in_features), jnp.float32)

    y = test_linear_forward(x, weight, bias)
    y = jax.block_until_ready(y)

    # Reference check (plain JAX, same semantics as TestLinear.forward).
    ref = (jnp.einsum("bsk,nk->bsn", x.astype(jnp.bfloat16), weight,
                      preferred_element_type=jnp.float32)
           + bias).astype(jnp.bfloat16).astype(x.dtype)
    assert y.shape == (batch, seq, out_features)
    assert y.dtype == x.dtype
    assert jnp.allclose(y, ref, atol=2e-2, rtol=2e-2)

    # Also exercise the same-dtype branch (x.dtype == weight.dtype).
    xb = x.astype(jnp.bfloat16)
    yb = jax.block_until_ready(test_linear_forward(xb, weight, bias))
    refb = (jnp.einsum("bsk,nk->bsn", xb, weight,
                       preferred_element_type=jnp.float32) + bias).astype(jnp.bfloat16)
    assert yb.dtype == jnp.bfloat16
    assert jnp.allclose(yb.astype(jnp.float32), refb.astype(jnp.float32),
                        atol=2e-2, rtol=2e-2)

    print("KERNEL_OK")
</pallas_src>

<mosaic_0001>
module attributes {stable_mosaic.version = 11 : i64} {
  func.func @_linear_kernel_full_k(%arg0: i32, %arg1: i32, %arg2: i32, %arg3: memref<16x32xf32, #tpu.memory_space<vmem>>, %arg4: memref<16x32xbf16, #tpu.memory_space<vmem>>, %arg5: memref<1x16xf32, #tpu.memory_space<vmem>>, %arg6: memref<16x16xf32, #tpu.memory_space<vmem>>) attributes {dimension_semantics = [#tpu.dimension_semantics<parallel>, #tpu.dimension_semantics<parallel>, #tpu.dimension_semantics<arbitrary>], iteration_bounds = array<i64: 1, 1, 1>, scalar_prefetch = 0 : i64, scratch_operands = 0 : i64, tpu.core_type = #tpu.core_type<tc>, window_params = [{transform_indices = @transform_0, window_bounds = array<i64: 16, 32>}, {transform_indices = @transform_1, window_bounds = array<i64: 16, 32>}, {transform_indices = @transform_2, window_bounds = array<i64: 1, 16>}, {transform_indices = @transform_3, window_bounds = array<i64: 16, 16>}]} {
    %c0 = arith.constant 0 : index
    %c0_0 = arith.constant 0 : index
    %0 = vector.load %arg3[%c0, %c0_0] : memref<16x32xf32, #tpu.memory_space<vmem>>, vector<16x32xf32>
    %1 = arith.truncf %0 : vector<16x32xf32> to vector<16x32xbf16>
    %c0_1 = arith.constant 0 : index
    %c0_2 = arith.constant 0 : index
    %2 = vector.load %arg4[%c0_1, %c0_2] : memref<16x32xbf16, #tpu.memory_space<vmem>>, vector<16x32xbf16>
    %cst = arith.constant dense<0.000000e+00> : vector<16x16xf32>
    %3 = tpu.matmul %1, %2, %cst {dimension_numbers = #tpu.dot_dimension_numbers<[1], [1], [0], [0], [0, 0, 1, 0], [], []>} : vector<16x32xbf16>, vector<16x32xbf16>, vector<16x16xf32> -> vector<16x16xf32>
    %c0_3 = arith.constant 0 : index
    %c0_4 = arith.constant 0 : index
    %4 = vector.load %arg5[%c0_3, %c0_4] : memref<1x16xf32, #tpu.memory_space<vmem>>, vector<1x16xf32>
    %5 = vector.broadcast %4 : vector<1x16xf32> to vector<16x16xf32>
    %6 = arith.addf %3, %5 : vector<16x16xf32>
    %7 = arith.truncf %6 : vector<16x16xf32> to vector<16x16xbf16>
    %8 = arith.extf %7 : vector<16x16xbf16> to vector<16x16xf32>
    %c0_5 = arith.constant 0 : index
    %c0_6 = arith.constant 0 : index
    %9 = vector.load %arg6[%c0_5, %c0_6] : memref<16x16xf32, #tpu.memory_space<vmem>>, vector<16x16xf32>
    tpu.vector_store %arg6[%c0_5, %c0_6], %8 {strides = array<i32>} : memref<16x16xf32, #tpu.memory_space<vmem>>, vector<16x16xf32>,
    return
  }
  func.func @transform_0(%arg0: i32, %arg1: i32, %arg2: i32) -> (i32, i32) {
    %c0_i32 = arith.constant 0 : i32
    return %arg0, %arg2 : i32, i32
  }
  func.func @transform_1(%arg0: i32, %arg1: i32, %arg2: i32) -> (i32, i32) {
    %c0_i32 = arith.constant 0 : i32
    return %arg1, %arg2 : i32, i32
  }
  func.func @transform_2(%arg0: i32, %arg1: i32, %arg2: i32) -> (i32, i32) {
    %c0_i32 = arith.constant 0 : i32
    %c0_i32_0 = arith.constant 0 : i32
    return %c0_i32, %arg1 : i32, i32
  }
  func.func @transform_3(%arg0: i32, %arg1: i32, %arg2: i32) -> (i32, i32) {
    %c0_i32 = arith.constant 0 : i32
    return %arg0, %arg1 : i32, i32
  }
}

</mosaic_0001>

<llo_original>
// kernel: test_linear_forward.1
$region0: #{test_linear_forward.1}
  #allocation0 [shape = 'u32[]', space=smem, size = 0x4, offset = 0x4, fixed_abs, tag = 'smem constant byte address 0x4 - core index']
  #allocation1 [shape = 'u32[144,128]{1,0:T(1,128)}', space=vmem, size = 0x12000, scoped, tag = 'internal scratch']
  %s0 = inlined_call_operand.hbm [shape: f32[16,32], index: 0, kind: input, shape index: {}]
  %s1 = inlined_call_operand.hbm [shape: bf16[16,32], index: 1, kind: input, shape index: {}]
  %s2 = inlined_call_operand.vmem [shape: f32[1,16], index: 2, kind: input, shape index: {}]
  %s3 = inlined_call_operand.hbm [shape: f32[16,16], index: 3, kind: output, shape index: {}]
  %s4 = sld [smem:[#allocation0]]
  $region30: #{test_linear_forward.1} parent=0
    _
  %s6 = ssub.s32 1, %s4
  %s7 = scalar_select 0, %s6, %s4
  $region1: #{test_linear_forward.1} parent=0
    #allocation2 [shape = 'u8[8192]{0}', space=vmem, size = 0x2000, scoped, tag = 'input window, operand 0, single buffered']
    #allocation3 [shape = 's32[1]{0}', space=sflag, size = 0x4, scoped, tag = 'scoped memory for test_linear_forward.1']
    #allocation4 [shape = 's32[1]{0}', space=sflag, size = 0x4, scoped, tag = 'scoped memory for test_linear_forward.1']
    #allocation5 [shape = 'u8[4096]{0}', space=vmem, size = 0x1000, scoped, tag = 'input window, operand 1, single buffered']
    #allocation6 [shape = 's32[1]{0}', space=sflag, size = 0x4, scoped, tag = 'scoped memory for test_linear_forward.1']
    #allocation7 [shape = 'u8[8192]{0}', space=vmem, size = 0x2000, scoped, tag = 'output window, operand 0, single buffered']
    %8 = vsyncpa [#allocation3], 0
    %9 = vsyncpa [#allocation6], 0
    %10 = vsyncpa [#allocation4], 0
    // Predicated region
    $region2: #{test_linear_forward.1} parent=1 // pred_check
      _
    $region3: #{test_linear_forward.1} parent=1 // pred_check_branch
      %12 = sbr.rel (0) target = $region5
    $region4: #{test_linear_forward.1} parent=1 // pred_region
      %s14 = ssub.s32 256, 256
      %15 = vsyncadd [#allocation3], %s14
      %s16 = sshll.u32 [#allocation2], 4
      %s17 = int_to_ptr.vmem [resolvable:$true] %s16
      %22 = dma.hbm_to_vmem [thread:$0]  %s0, 256, %s17, [#allocation3], 128, 128, 8
    $region5: #{test_linear_forward.1} parent=1 // pred_fallthru
      _
    // Predicated region
    $region6: #{test_linear_forward.1} parent=1 // pred_check
      _
    $region7: #{test_linear_forward.1} parent=1 // pred_check_branch
      %24 = sbr.rel (0) target = $region9
    $region8: #{test_linear_forward.1} parent=1 // pred_region
      %s26 = ssub.s32 128, 128
      %27 = vsyncadd [#allocation6], %s26
      %s28 = sshll.u32 [#allocation5], 4
      %s29 = int_to_ptr.vmem [resolvable:$true] %s28
      %34 = dma.hbm_to_vmem [thread:$0]  %s1, 128, %s29, [#allocation6], 64, 64, 4
    $region9: #{test_linear_forward.1} parent=1 // pred_fallthru
      _
    // Predicated region
    $region10: #{test_linear_forward.1} parent=1 // pred_check
      _
    $region11: #{test_linear_forward.1} parent=1 // pred_check_branch
      %36 = sbr.rel (0) target = $region13
    $region12: #{test_linear_forward.1} parent=1 // pred_region
      _
    $region13: #{test_linear_forward.1} parent=1 // pred_fallthru
      _
    // Predicated region
    $region14: #{test_linear_forward.1} parent=1 // pred_check
      _
    $region15: #{test_linear_forward.1} parent=1 // pred_check_branch
      %38 = sbr.rel (0) target = $region17
    $region16: #{test_linear_forward.1} parent=1 // pred_region
      %39 = dma.done [#allocation3], 256
    $region17: #{test_linear_forward.1} parent=1 // pred_fallthru
      _
    // Predicated region
    $region18: #{test_linear_forward.1} parent=1 // pred_check
      _
    $region19: #{test_linear_forward.1} parent=1 // pred_check_branch
      %41 = sbr.rel (0) target = $region21
    $region20: #{test_linear_forward.1} parent=1 // pred_region
      %42 = dma.done [#allocation6], 128
    $region21: #{test_linear_forward.1} parent=1 // pred_fallthru
      _
    %v44 = vld [vmem:[#allocation2] sm:$0xff]
    %v45 = vld [vmem:[#allocation2 + $0x8] sm:$0xff]
    %v46 = vpack.c.bf16 %v45, %v44
    %v47 = vld [vmem:[#allocation5] sm:$0xf]
    %v48 = vld [vmem:[#allocation5 + $0x4] sm:$0xf]
    %v49 = vld [vmem:[%s2] sm:$0x1]
    %v51 = vlaneseq
    %v52 = vshrl.u32 %v51, 7
    %v53 = vsub.s32 0, %v52
    %v54 = vrot.slane %v49, %v53
    %v58 = vunpack.c.l.b16 %v47
    %v59 = vunpack.c.l.b16 %v48
    %v60 = vpack.c.b16 %v59, %v58
    %vm61 = vcmask 261120
    %v63 = vsel %vm61, %v46, 0
    %v66 = vsel %vm61, %v60, 0
    %68 = vmatprep.subr.bf16.mxu0 0
    %69 = vmatpush1.bf16.xpose.msra.mxu0 0
    %70 = vmatprep.subr.bf16.mxu0 0
    %71 = vmatpush1.bf16.xpose.msra.mxu0 0
    %72 = vmatprep.subr.bf16.mxu0 0
    %73 = vmatpush1.bf16.xpose.msra.mxu0 0
    %74 = vmatprep.subr.bf16.mxu0 0
    %75 = vmatpush1.bf16.xpose.msra.mxu0 0
    %76 = vmatprep.subr.bf16.mxu0 0
    %77 = vmatpush1.bf16.xpose.msra.mxu0 0
    %78 = vmatprep.subr.bf16.mxu0 0
    %79 = vmatpush1.bf16.xpose.msra.mxu0 0
    %80 = vmatprep.subr.bf16.mxu0 0
    %81 = vmatpush1.bf16.xpose.msra.mxu0 0
    %82 = vmatprep.subr.bf16.mxu0 0
    %83 = vmatpush1.bf16.xpose.msra.mxu0 %v66
    %84 = vmatprep.subr.bf16.mxu0 0
    %85 = vmatpush2.bf16.xpose.msra.mxu0 0
    %86 = vmatprep.subr.bf16.mxu0 0
    %87 = vmatpush2.bf16.xpose.msra.mxu0 0
    %88 = vmatprep.subr.bf16.mxu0 0
    %89 = vmatpush2.bf16.xpose.msra.mxu0 0
    %90 = vmatprep.subr.bf16.mxu0 0
    %91 = vmatpush2.bf16.xpose.msra.mxu0 0
    %92 = vmatprep.subr.bf16.mxu0 0
    %93 = vmatpush2.bf16.xpose.msra.mxu0 0
    %94 = vmatprep.subr.bf16.mxu0 0
    %95 = vmatpush2.bf16.xpose.msra.mxu0 0
    %96 = vmatprep.subr.bf16.mxu0 0
    %97 = vmatpush2.bf16.xpose.msra.mxu0 0
    %98 = vmatprep.subr.bf16.mxu0 0
    %99 = vmatpush2.bf16.xpose.msra.mxu0 0
    %100 = vmatprep.mubr.bf16.mxu0 0
    %101 = vmatmul.mubr.bf16.gmra.mxu0 %v63
    %v102 = vpop.f32.mrf.mxu0
    %v103 = vadd.f32 %v54, %v102
    %v104 = vpop.f32.mrf.mxu0
    %v105 = vpop.f32.mrf.mxu0
    %v106 = vadd.f32 %v54, %v105
    %v107 = vpop.f32.mrf.mxu0
    %108 = vdwg.mxu0
    %v109 = vpack.c.bf16 %v106, %v103
    %v110 = vunpack.c.l.bf16 %v109
    %v111 = vunpack.c.h.bf16 %v109
    %vm112 = vcmask 130048
    %113 = vst.msk [vmem:[#allocation7] sm:$0xff] %vm112, %v110
    %114 = vst.msk [vmem:[#allocation7 + $0x8] sm:$0xff] %vm112, %v111
    // Predicated region
    $region22: #{test_linear_forward.1} parent=1 // pred_check
      _
    $region23: #{test_linear_forward.1} parent=1 // pred_check_branch
      %116 = sbr.rel (0) target = $region25
    $region24: #{test_linear_forward.1} parent=1 // pred_region
      %s118 = ssub.s32 256, 256
      %119 = vsyncadd [#allocation4], %s118
      %s120 = sshll.u32 [#allocation7], 4
      %s121 = int_to_ptr.vmem [resolvable:$true] %s120
      %126 = dma.vmem_to_hbm [thread:$0]  %s121, 256, %s3, [#allocation4], 128, 128, 8
    $region25: #{test_linear_forward.1} parent=1 // pred_fallthru
      _
    // Predicated region
    $region26: #{test_linear_forward.1} parent=1 // pred_check
      _
    $region27: #{test_linear_forward.1} parent=1 // pred_check_branch
      %128 = sbr.rel (0) target = $region29
    $region28: #{test_linear_forward.1} parent=1 // pred_region
      %129 = dma.done [#allocation4], 256
    $region29: #{test_linear_forward.1} parent=1 // pred_fallthru
      _
    %130 = vsyncpa [#allocation3], 1
    %131 = vsyncpa [#allocation6], 1
    %132 = vsyncpa [#allocation4], 1

</llo_original>
